<compile_context>
chip_gen: v7x
topology: tpu7x:2x2x1
jax: 0.10.0
libtpu: 0.0.40
codegen_flags: <defaults>
</compile_context>

<pallas_src>
import math
from collections import namedtuple
from functools import partial

import numpy as np
import jax
import jax.numpy as jnp
from jax.experimental import pallas as pl
from jax.experimental.pallas import tpu as pltpu

_DEFAULT_TILE_F = 1024  # frames (rows) per MXU pass; ~8-10 MiB VMEM double-buffered


def _round_up(x: int, m: int) -> int:
    return ((x + m - 1) // m) * m


def _bucket_length(L: int, base: int = 2048, ratio: float = 1.25) -> int:
    """Geometric length buckets (<=25% padding waste, bounded #compiled variants)."""
    b = base
    while b < L:
        b = _round_up(int(math.ceil(b * ratio)), 128)
    return b


def _pick_tile_f(F: int, B: int, use_bf16: bool) -> int:
    align = 16 if use_bf16 else 8
    tile = min(_DEFAULT_TILE_F, _round_up(F, align))
    if B == 1 and F > 2 * align:
        # keep >= 2 frame blocks so both v7x TensorCores get work
        tile = min(tile, _round_up((F + 1) // 2, align))
    return max(align, tile)


# ----------------------------------------------------------------------------
# Pallas kernel: resampling conv as two accumulated MXU matmuls.
#   main_ref : (tile_f, orig)   rows f   of the framed waveform (k in [0, orig))
#   tail_ref : (tile_f, tw)     rows f+1 of the framed waveform (k in [orig, orig+tw))
#   fmain    : (orig, new)      filter rows 0..orig-1
#   ftail    : (tw,   new)      filter rows orig..orig+2*width-1, zero-padded to tw
#   out_ref  : (tile_f, new)
# ----------------------------------------------------------------------------
def _resample_kernel(main_ref, tail_ref, fmain_ref, ftail_ref, out_ref):
    m = main_ref[...]
    t = tail_ref[...]
    if fmain_ref.dtype != m.dtype:
        # opt-in bf16 MXU operands: cast in VMEM so HBM reads stay f32-only.
        m = m.astype(fmain_ref.dtype)
        t = t.astype(ftail_ref.dtype)
    acc = jnp.dot(m, fmain_ref[...], preferred_element_type=jnp.float32)
    acc = acc + jnp.dot(t, ftail_ref[...], preferred_element_type=jnp.float32)
    out_ref[...] = acc


def _pallas_resample(main3, tail3, fmain, ftail, *, F, new, tile_f):
    """main3: (B, F+1, orig) f32, tail3: (B, F, tw) f32 -> (B, F, new) f32."""
    B, _, orig = main3.shape
    tw = tail3.shape[2]
    n_f = pl.cdiv(F, tile_f)

    cost = pl.CostEstimate(
        flops=2 * B * F * (orig + tw) * new,
        transcendentals=0,
        bytes_accessed=int(
            main3.size * main3.dtype.itemsize
            + tail3.size * tail3.dtype.itemsize
            + fmain.size * fmain.dtype.itemsize
            + ftail.size * ftail.dtype.itemsize
            + B * F * new * 4
        ),
    )

    return pl.pallas_call(
        _resample_kernel,
        out_shape=jax.ShapeDtypeStruct((B, F, new), jnp.float32),
        grid_spec=pltpu.PrefetchScalarGridSpec(
            num_scalar_prefetch=0,
            grid=(B, n_f),
            in_specs=[
                # full-last-dim blocks (441 / tw / new equal the array dims -> legal)
                pl.BlockSpec((None, tile_f, orig), lambda b, i: (b, i, 0)),
                pl.BlockSpec((None, tile_f, tw), lambda b, i: (b, i, 0)),
                pl.BlockSpec((orig, new), lambda b, i: (0, 0)),   # resident filter
                pl.BlockSpec((tw, new), lambda b, i: (0, 0)),     # resident filter
            ],
            out_specs=pl.BlockSpec((None, tile_f, new), lambda b, i: (b, i, 0)),
        ),
        compiler_params=pltpu.CompilerParams(
            dimension_semantics=("parallel", "parallel")),
        cost_estimate=cost,
    )(main3, tail3, fmain, ftail)


@partial(jax.jit, static_argnames=("tile_f",))
def _resample_padded(padded, fmain, ftail, *, tile_f):
    """padded: (B, (F+1)*orig) f32, already left-padded by `width` and zero-filled."""
    B, Lp = padded.shape
    orig, new = fmain.shape
    tw = ftail.shape[0]
    F = Lp // orig - 1
    x3 = padded.reshape(B, F + 1, orig)       # contiguous -> free reshape
    tail = x3[:, 1:, :tw]                     # tiny (B, F, tw) overlap copy
    out = _pallas_resample(x3, tail, fmain, ftail, F=F, new=new, tile_f=tile_f)
    return out.reshape(B, F * new)            # contiguous -> free reshape


# ----------------------------------------------------------------------------
# Deterministic sinc filter bank (torchaudio Resample defaults:
# lowpass_filter_width=6, rolloff=0.99, method="sinc_interp_hann").
# ----------------------------------------------------------------------------
def _sinc_resample_kernel(orig_freq, new_freq, lowpass_filter_width=6, rolloff=0.99):
    gcd = math.gcd(orig_freq, new_freq)
    orig = orig_freq // gcd
    new = new_freq // gcd
    base_freq = min(orig, new) * rolloff
    width = int(math.ceil(lowpass_filter_width * orig / base_freq))

    idx = np.arange(-width, width + orig, dtype=np.float64)[None, :] / orig
    t = np.arange(0, -new, -1, dtype=np.float64)[:, None] / new + idx
    t = t * base_freq
    t = np.clip(t, -lowpass_filter_width, lowpass_filter_width)
    window = np.cos(t * math.pi / lowpass_filter_width / 2.0) ** 2
    t = t * math.pi
    scale = base_freq / orig
    kernels = np.where(t == 0.0, 1.0, np.sin(t) / np.where(t == 0.0, 1.0, t))
    kernels = kernels * window * scale  # (new, KW) with KW = 2*width + orig
    return kernels.astype(np.float32), width, orig, new


_FilterBank = namedtuple("_FilterBank", "fmain ftail width orig new tw")


def _build_filter_bank(orig_freq, new_freq, use_bf16=False):
    kernels, width, orig, new = _sinc_resample_kernel(orig_freq, new_freq)
    kw = kernels.shape[1]                       # 2*width + orig
    tw = _round_up(kw - orig, 8)                # overlap columns (18/34 -> 24/40)
    fmain = np.ascontiguousarray(kernels.T[:orig, :])          # (orig, new)
    ftail = np.zeros((tw, new), np.float32)
    ftail[: kw - orig, :] = kernels.T[orig:kw, :]              # zero rows beyond 2*width
    dtype = jnp.bfloat16 if use_bf16 else jnp.float32
    return _FilterBank(jnp.asarray(fmain, dtype=dtype),
                       jnp.asarray(ftail, dtype=dtype),
                       width, orig, new, tw)


def pad_sequence(wavs):
    """torch.nn.utils.rnn.pad_sequence(batch_first=True) for 1-D waveforms."""
    longest = max(w.shape[-1] for w in wavs)
    return jnp.stack([jnp.pad(w, (0, longest - w.shape[-1])) for w in wavs])


# ----------------------------------------------------------------------------
# DataProcessor
# ----------------------------------------------------------------------------
class DataProcessor:
    """Resamples a list of raw waveforms to target_rate (default 16 kHz)."""

    def __init__(self, target_rate: int = 16000, use_bf16: bool = False) -> None:
        self.target_rate = target_rate
        # use_bf16: bf16 MXU operands (f32 accumulate), ~1e-3 rel error; the
        # recommended setting on v6e/v7x where the MXU is bf16-native.
        self.use_bf16 = use_bf16
        self._banks = {
            22050: _build_filter_bank(22050, target_rate, use_bf16),
            44100: _build_filter_bank(44100, target_rate, use_bf16),
        }

    def _resample(self, x, orig_rate):
        bank = self._banks[orig_rate]
        B, L = x.shape
        # Output length from the TRUE padded-batch length, matching torchaudio.
        target_length = int(math.ceil(bank.new * L / bank.orig))

        # Bucket the length so one compiled kernel is reused across batches.
        L_b = _bucket_length(L)
        F = L_b // bank.orig + 1                       # frames computed by the kernel
        pad_total = (F + 1) * bank.orig                # +1 frame so the tail never OOBs
        padded = jnp.pad(x, ((0, 0), (bank.width, pad_total - bank.width - L)))

        tile_f = _pick_tile_f(F, B, self.use_bf16)
        y = _resample_padded(padded, bank.fmain, bank.ftail, tile_f=tile_f)
        return y[:, :target_length]

    def forward(self, x, sample_rate: int = 16000):
        if sample_rate == 16000:
            return x
        longest_len = max(x, key=lambda y: y.shape[-1]).shape[-1]
        wav_percent = [x[i].shape[-1] / longest_len for i in range(len(x))]
        x = pad_sequence(x)
        if sample_rate == 22050:
            x = self._resample(x, 22050)
        elif sample_rate == 44100:
            x = self._resample(x, 44100)
        else:
            return x  # quirk preserved: returns the padded 2-D batch tensor
        wav_len = [int(percent * x.shape[-1]) for percent in wav_percent]
        return self.unpad_sequence(x, wav_len)

    def unpad_sequence(self, x, wav_len):
        return [x[i, : wav_len[i]] for i in range(len(wav_len))]

    __call__ = forward


# ----------------------------------------------------------------------------
if __name__ == "__main__":
    key = jax.random.PRNGKey(0)
    lengths = [1200, 1764, 900]  # ragged utterances
    keys = jax.random.split(key, len(lengths))
    wavs = [jax.random.normal(k, (n,), dtype=jnp.float32) for k, n in zip(keys, lengths)]

    dp = DataProcessor(target_rate=16000)

    # 16 kHz passthrough path (returns the input list untouched)
    out16 = dp(wavs, sample_rate=16000)
    assert out16 is wavs

    def reference(wav_list, orig_freq):
        """Plain-JAX reference using the unsplit torchaudio filter bank."""
        kern, width, orig, new = _sinc_resample_kernel(orig_freq, 16000)
        filt = jnp.asarray(kern.T)                      # (KW, new)
        xpad = pad_sequence(wav_list)
        padded = jnp.pad(xpad, ((0, 0), (width, width + orig)))
        KW = filt.shape[0]
        F = (padded.shape[1] - KW) // orig + 1
        idx = np.arange(F)[:, None] * orig + np.arange(KW)[None, :]
        ref = jnp.einsum("bfk,kc->bfc", padded[:, idx], filt).reshape(len(wav_list), -1)
        tl = int(math.ceil(new * xpad.shape[-1] / orig))
        return ref[:, :tl], tl

    longest = max(lengths)
    for sr in (22050, 44100):
        out = dp(wavs, sample_rate=sr)
        out = [jax.block_until_ready(o) for o in out]
        ref, target_length = reference(wavs, sr)
        for i, o in enumerate(out):
            n_i = int(lengths[i] / longest * target_length)
            assert o.shape == (n_i,), (o.shape, n_i)
            np.testing.assert_allclose(
                np.asarray(o), np.asarray(ref[i, :n_i]), rtol=1e-5, atol=1e-5
            )

    # Opt-in bf16 MXU-operand path (the v6e/v7x perf lever): looser tolerance.
    dp_bf16 = DataProcessor(target_rate=16000, use_bf16=True)
    for sr in (22050, 44100):
        out = dp_bf16(wavs, sample_rate=sr)
        out = [jax.block_until_ready(o) for o in out]
        ref, target_length = reference(wavs, sr)
        for i, o in enumerate(out):
            n_i = int(lengths[i] / longest * target_length)
            np.testing.assert_allclose(
                np.asarray(o), np.asarray(ref[i, :n_i]), rtol=5e-2, atol=5e-2
            )

    print("KERNEL_OK")
</pallas_src>

<mosaic_0001>
module attributes {stable_mosaic.version = 11 : i64} {
  func.func @_resample_kernel(%arg0: i32, %arg1: i32, %arg2: memref<1x8x441xf32, #tpu.memory_space<vmem>>, %arg3: memref<1x8x24xf32, #tpu.memory_space<vmem>>, %arg4: memref<441x320xf32, #tpu.memory_space<vmem>>, %arg5: memref<24x320xf32, #tpu.memory_space<vmem>>, %arg6: memref<1x8x320xf32, #tpu.memory_space<vmem>>) attributes {dimension_semantics = [#tpu.dimension_semantics<parallel>, #tpu.dimension_semantics<parallel>], iteration_bounds = array<i64: 3, 1>, scalar_prefetch = 0 : i64, scratch_operands = 0 : i64, tpu.core_type = #tpu.core_type<tc>, window_params = [{transform_indices = @transform_0, window_bounds = array<i64: 1, 8, 441>}, {transform_indices = @transform_1, window_bounds = array<i64: 1, 8, 24>}, {pipeline_mode = #tpu.pipeline_mode<synchronous>, transform_indices = @transform_2, window_bounds = array<i64: 441, 320>}, {pipeline_mode = #tpu.pipeline_mode<synchronous>, transform_indices = @transform_3, window_bounds = array<i64: 24, 320>}, {transform_indices = @transform_4, window_bounds = array<i64: 1, 8, 320>}]} {
    %c0 = arith.constant 0 : index
    %c0_0 = arith.constant 0 : index
    %c0_1 = arith.constant 0 : index
    %0 = vector.load %arg2[%c0, %c0_0, %c0_1] : memref<1x8x441xf32, #tpu.memory_space<vmem>>, vector<1x8x441xf32>
    %1 = vector.shape_cast %0 : vector<1x8x441xf32> to vector<8x441xf32>
    %c0_2 = arith.constant 0 : index
    %c0_3 = arith.constant 0 : index
    %c0_4 = arith.constant 0 : index
    %2 = vector.load %arg3[%c0_2, %c0_3, %c0_4] : memref<1x8x24xf32, #tpu.memory_space<vmem>>, vector<1x8x24xf32>
    %3 = vector.shape_cast %2 : vector<1x8x24xf32> to vector<8x24xf32>
    %c0_5 = arith.constant 0 : index
    %c0_6 = arith.constant 0 : index
    %4 = vector.load %arg4[%c0_5, %c0_6] : memref<441x320xf32, #tpu.memory_space<vmem>>, vector<441x320xf32>
    %cst = arith.constant dense<0.000000e+00> : vector<8x320xf32>
    %5 = tpu.matmul %1, %4, %cst {dimension_numbers = #tpu.dot_dimension_numbers<[1], [0], [0], [1], [0, 0, 1, 1], [], []>} : vector<8x441xf32>, vector<441x320xf32>, vector<8x320xf32> -> vector<8x320xf32>
    %c0_7 = arith.constant 0 : index
    %c0_8 = arith.constant 0 : index
    %6 = vector.load %arg5[%c0_7, %c0_8] : memref<24x320xf32, #tpu.memory_space<vmem>>, vector<24x320xf32>
    %cst_9 = arith.constant dense<0.000000e+00> : vector<8x320xf32>
    %7 = tpu.matmul %3, %6, %cst_9 {dimension_numbers = #tpu.dot_dimension_numbers<[1], [0], [0], [1], [0, 0, 1, 1], [], []>} : vector<8x24xf32>, vector<24x320xf32>, vector<8x320xf32> -> vector<8x320xf32>
    %8 = arith.addf %5, %7 : vector<8x320xf32>
    %c0_10 = arith.constant 0 : index
    %c0_11 = arith.constant 0 : index
    %c0_12 = arith.constant 0 : index
    %9 = vector.load %arg6[%c0_10, %c0_11, %c0_12] : memref<1x8x320xf32, #tpu.memory_space<vmem>>, vector<1x8x320xf32>
    %10 = vector.shape_cast %9 : vector<1x8x320xf32> to vector<8x320xf32>
    %11 = vector.shape_cast %8 : vector<8x320xf32> to vector<1x8x320xf32>
    tpu.vector_store %arg6[%c0_10, %c0_11, %c0_12], %11 {strides = array<i32>} : memref<1x8x320xf32, #tpu.memory_space<vmem>>, vector<1x8x320xf32>,
    return
  }
  func.func @transform_0(%arg0: i32, %arg1: i32) -> (i32, i32, i32) {
    %c0_i32 = arith.constant 0 : i32
    %c0_i32_0 = arith.constant 0 : i32
    return %arg0, %arg1, %c0_i32 : i32, i32, i32
  }
  func.func @transform_1(%arg0: i32, %arg1: i32) -> (i32, i32, i32) {
    %c0_i32 = arith.constant 0 : i32
    %c0_i32_0 = arith.constant 0 : i32
    return %arg0, %arg1, %c0_i32 : i32, i32, i32
  }
  func.func @transform_2(%arg0: i32, %arg1: i32) -> (i32, i32) {
    %c0_i32 = arith.constant 0 : i32
    %c0_i32_0 = arith.constant 0 : i32
    %c0_i32_1 = arith.constant 0 : i32
    return %c0_i32, %c0_i32_0 : i32, i32
  }
  func.func @transform_3(%arg0: i32, %arg1: i32) -> (i32, i32) {
    %c0_i32 = arith.constant 0 : i32
    %c0_i32_0 = arith.constant 0 : i32
    %c0_i32_1 = arith.constant 0 : i32
    return %c0_i32, %c0_i32_0 : i32, i32
  }
  func.func @transform_4(%arg0: i32, %arg1: i32) -> (i32, i32, i32) {
    %c0_i32 = arith.constant 0 : i32
    %c0_i32_0 = arith.constant 0 : i32
    return %arg0, %arg1, %c0_i32 : i32, i32, i32
  }
}

</mosaic_0001>

<llo_original>
// kernel: _resample_padded.1
$region0: #{_resample_padded.1}
  #allocation0 [shape = 'u32[]', space=smem, size = 0x4, offset = 0x4, fixed_abs, tag = 'smem constant byte address 0x4 - core index']
  #allocation1 [shape = 'u32[144,128]{1,0:T(1,128)}', space=vmem, size = 0x12000, scoped, tag = 'internal scratch']
  %s0 = inlined_call_operand.vmem [shape: f32[3,6,441], index: 0, kind: input, shape index: {}]
  %s1 = inlined_call_operand.vmem [shape: f32[3,5,24], index: 1, kind: input, shape index: {}]
  %s2 = inlined_call_operand.vmem [shape: f32[441,320], index: 2, kind: input, shape index: {}]
  %s3 = inlined_call_operand.vmem [shape: f32[24,320], index: 3, kind: input, shape index: {}]
  %s4 = inlined_call_operand.vmem [shape: f32[3,5,320], index: 4, kind: output, shape index: {}]
  %s5 = sld [smem:[#allocation0]]
  $region49: #{_resample_padded.1} parent=0
    _
  %s7 = ssub.s32 1, %s5
  %s8 = scalar_select 0, %s7, %s5
  loop: start=0, step=1, limit=5
  $region2: #{_resample_padded.1} parent=0 // loop_pre_header
    _
  $region3: #{_resample_padded.1} parent=0 // loop_header
    %s10 = sphi 0, %s14
    %p11 = scmp.ge.s32.totalorder %s10, 5
    %s17 = sphi 0, %s29
    %s18 = sphi 0, %s25
    %s19 = sphi 0, %s17
    %s20 = sphi 0, %s18
    %s21 = sphi 0, %s19
    %s22 = sphi 0, %s20
    %s34 = sphi 0, %s36
    %s37 = sphi 0, %s34
    %s38 = sphi 0, %s37
    %s54 = sphi 0, %s38
    %s62 = sphi 0, %s64
    %s65 = sphi 0, %s62
    %s66 = sphi 0, %s65
    %s82 = sphi 0, %s66
    %s86 = sphi 0, %s86
    %s88 = sphi 0, %s86
    %s89 = sphi 0, %s88
    %s103 = sphi 0, %s89
    %s107 = sphi 0, %s107
    %s109 = sphi 0, %s107
    %s110 = sphi 0, %s109
    %s124 = sphi 0, %s110
    %s132 = sphi 0, %s134
    %s135 = sphi 0, %s132
    %s136 = sphi 0, %s135
    %s152 = sphi 0, %s136
  $region4: #{_resample_padded.1} parent=0 // loop_header_branch
    %13 = sbr.rel (%p11) target = $region8
  $region5: #{_resample_padded.1} parent=0 // loop_body
    %s15 = ssub.s32 %s10, 1
    %s16 = ssub.s32 %s10, 2
    %s23 = sadd.s32 1, %s18
    %p24 = scmp.ge.s32.totalorder %s23, 1
    %s25 = scalar_select %p24, 0, %s23
    %s26 = sadd.s32 1, %s17
    %s27 = scalar_select %p24, %s26, %s17
    %p28 = scmp.ge.s32.totalorder %s27, 3
    %s29 = scalar_select %p28, 0, %s27
    %s30 = ssub.s32 %s17, %s29
    %s31 = ssub.s32 %s18, %s25
    %s32 = sor.u32 %s30, %s31
    %p33 = scmp.eq.s32.totalorder %s32, 0
    %s35 = sadd.s32 %s34, 1
    %s36 = scalar_select %p33, %s34, %s35
    %p39 = pneg %p33
    %p40 = scmp.eq.s32.totalorder %s10, 2
    %p41 = por %p39, %p40
    %p42 = scmp.ne.s32.totalorder %s34, %s37
    %p43 = scmp.eq.s32.totalorder %s10, 0
    %p44 = por %p42, %p43
    %p45 = scmp.ne.s32.totalorder %s34, %s37
    %p46 = scmp.eq.s32.totalorder %s15, 2
    %p47 = por %p45, %p46
    %p48 = scmp.ne.s32.totalorder %s37, %s38
    %p49 = scmp.eq.s32.totalorder %s15, 0
    %p50 = por %p48, %p49
    %p51 = scmp.ne.s32.totalorder %s37, %s38
    %p52 = scmp.eq.s32.totalorder %s16, 2
    %p53 = por %p51, %p52
    %p55 = scmp.ne.s32.totalorder %s38, %s54
    %p56 = scmp.eq.s32.totalorder %s16, 0
    %p57 = por %p55, %p56
    %s58 = ssub.s32 %s17, %s29
    %s59 = ssub.s32 %s18, %s25
    %s60 = sor.u32 %s58, %s59
    %p61 = scmp.eq.s32.totalorder %s60, 0
    %s63 = sadd.s32 %s62, 1
    %s64 = scalar_select %p61, %s62, %s63
    %p67 = pneg %p61
    %p68 = scmp.eq.s32.totalorder %s10, 2
    %p69 = por %p67, %p68
    %p70 = scmp.ne.s32.totalorder %s62, %s65
    %p71 = scmp.eq.s32.totalorder %s10, 0
    %p72 = por %p70, %p71
    %p73 = scmp.ne.s32.totalorder %s62, %s65
    %p74 = scmp.eq.s32.totalorder %s15, 2
    %p75 = por %p73, %p74
    %p76 = scmp.ne.s32.totalorder %s65, %s66
    %p77 = scmp.eq.s32.totalorder %s15, 0
    %p78 = por %p76, %p77
    %p79 = scmp.ne.s32.totalorder %s65, %s66
    %p80 = scmp.eq.s32.totalorder %s16, 2
    %p81 = por %p79, %p80
    %p83 = scmp.ne.s32.totalorder %s66, %s82
    %p84 = scmp.eq.s32.totalorder %s16, 0
    %p85 = por %p83, %p84
    %s87 = sadd.s32 %s86, 1
    %p90 = scmp.eq.s32.totalorder %s10, 2
    %p91 = scmp.ne.s32.totalorder %s86, %s88
    %p92 = scmp.eq.s32.totalorder %s10, 0
    %p93 = por %p91, %p92
    %p94 = scmp.ne.s32.totalorder %s86, %s88
    %p95 = scmp.eq.s32.totalorder %s15, 2
    %p96 = por %p94, %p95
    %p97 = scmp.ne.s32.totalorder %s88, %s89
    %p98 = scmp.eq.s32.totalorder %s15, 0
    %p99 = por %p97, %p98
    %p100 = scmp.ne.s32.totalorder %s88, %s89
    %p101 = scmp.eq.s32.totalorder %s16, 2
    %p102 = por %p100, %p101
    %p104 = scmp.ne.s32.totalorder %s89, %s103
    %p105 = scmp.eq.s32.totalorder %s16, 0
    %p106 = por %p104, %p105
    %s108 = sadd.s32 %s107, 1
    %p111 = scmp.eq.s32.totalorder %s10, 2
    %p112 = scmp.ne.s32.totalorder %s107, %s109
    %p113 = scmp.eq.s32.totalorder %s10, 0
    %p114 = por %p112, %p113
    %p115 = scmp.ne.s32.totalorder %s107, %s109
    %p116 = scmp.eq.s32.totalorder %s15, 2
    %p117 = por %p115, %p116
    %p118 = scmp.ne.s32.totalorder %s109, %s110
    %p119 = scmp.eq.s32.totalorder %s15, 0
    %p120 = por %p118, %p119
    %p121 = scmp.ne.s32.totalorder %s109, %s110
    %p122 = scmp.eq.s32.totalorder %s16, 2
    %p123 = por %p121, %p122
    %p125 = scmp.ne.s32.totalorder %s110, %s124
    %p126 = scmp.eq.s32.totalorder %s16, 0
    %p127 = por %p125, %p126
    %s128 = ssub.s32 %s17, %s29
    %s129 = ssub.s32 %s18, %s25
    %s130 = sor.u32 %s128, %s129
    %p131 = scmp.eq.s32.totalorder %s130, 0
    %s133 = sadd.s32 %s132, 1
    %s134 = scalar_select %p131, %s132, %s133
    %p137 = pneg %p131
    %p138 = scmp.eq.s32.totalorder %s10, 2
    %p139 = por %p137, %p138
    %p140 = scmp.ne.s32.totalorder %s132, %s135
    %p141 = scmp.eq.s32.totalorder %s10, 0
    %p142 = por %p140, %p141
    %p143 = scmp.ne.s32.totalorder %s132, %s135
    %p144 = scmp.eq.s32.totalorder %s15, 2
    %p145 = por %p143, %p144
    %p146 = scmp.ne.s32.totalorder %s135, %s136
    %p147 = scmp.eq.s32.totalorder %s15, 0
    %p148 = por %p146, %p147
    %p149 = scmp.ne.s32.totalorder %s135, %s136
    %p150 = scmp.eq.s32.totalorder %s16, 2
    %p151 = por %p149, %p150
    %p153 = scmp.ne.s32.totalorder %s136, %s152
    %p154 = scmp.eq.s32.totalorder %s16, 0
    %p155 = por %p153, %p154
    %p156 = scmp.le.s32.totalorder 1, %s10
    %p157 = scmp.lt.s32.totalorder %s10, 4
    %p158 = pnand %p156, %p157
    %p159 = pneg %p158
    // Predicated region
    $region9: #{_resample_padded.1} parent=5 // pred_check
      _
    $region10: #{_resample_padded.1} parent=5 // pred_check_branch
      %161 = sbr.rel (%p158) target = $region12
    $region11: #{_resample_padded.1} parent=5 // pred_region
      %s162 = ssub.s32 %s10, 1
      // Predicated region
      $region13: #{_resample_padded.1} parent=11 // pred_check
        %p163 = pneg %p99
      $region14: #{_resample_padded.1} parent=11 // pred_check_branch
        %165 = sbr.rel (%p163) target = $region16
      $region15: #{_resample_padded.1} parent=11 // pred_region
        _
      $region16: #{_resample_padded.1} parent=11 // pred_fallthru
        _
      // Predicated region
      $region17: #{_resample_padded.1} parent=11 // pred_check
        %p166 = pneg %p120
      $region18: #{_resample_padded.1} parent=11 // pred_check_branch
        %168 = sbr.rel (%p166) target = $region20
      $region19: #{_resample_padded.1} parent=11 // pred_region
        _
      $region20: #{_resample_padded.1} parent=11 // pred_fallthru
        _
    $region12: #{_resample_padded.1} parent=5 // pred_fallthru
      _
    %p169 = scmp.lt.s32.totalorder %s10, 3
    // Predicated region
    $region21: #{_resample_padded.1} parent=5 // pred_check
      %p170 = pneg %p169
    $region22: #{_resample_padded.1} parent=5 // pred_check_branch
      %172 = sbr.rel (%p170) target = $region24
    $region23: #{_resample_padded.1} parent=5 // pred_region
      // Predicated region
      $region25: #{_resample_padded.1} parent=23 // pred_check
        %p173 = pneg %p44
      $region26: #{_resample_padded.1} parent=23 // pred_check_branch
        %175 = sbr.rel (%p173) target = $region28
      $region27: #{_resample_padded.1} parent=23 // pred_region
        %p176 = scmp.lt.s32.totalorder %s17, 2
        %s177 = scalar_select %p176, %s17, 2
        %p178 = scmp.lt.s32.totalorder %s18, 0
        %s179 = scalar_select %p178, %s18, 0
        %s180 = smul.addr %s179, 4
        %s181 = smul.addr %s177, 4
        %s182 = sadd.s32 %s180, %s181
        %s183 = smul.addr %s182, 8
        %s184 = scalar_lea.vmem %s0, %s183
      $region28: #{_resample_padded.1} parent=23 // pred_fallthru
        _
      // Predicated region
      $region29: #{_resample_padded.1} parent=23 // pred_check
        %p185 = pneg %p72
      $region30: #{_resample_padded.1} parent=23 // pred_check_branch
        %187 = sbr.rel (%p185) target = $region32
      $region31: #{_resample_padded.1} parent=23 // pred_region
        %p188 = scmp.lt.s32.totalorder %s17, 2
        %s189 = scalar_select %p188, %s17, 2
        %p190 = scmp.lt.s32.totalorder %s18, 0
        %s191 = scalar_select %p190, %s18, 0
        %s192 = sadd.s32 %s191, %s189
        %s193 = smul.addr %s192, 8
        %s194 = scalar_lea.vmem %s1, %s193
      $region32: #{_resample_padded.1} parent=23 // pred_fallthru
        _
    $region24: #{_resample_padded.1} parent=5 // pred_fallthru
      _
    %p195 = scmp.le.s32.totalorder 1, %s10
    %p196 = scmp.lt.s32.totalorder %s10, 4
    %p197 = pnand %p195, %p196
    %p198 = pneg %p197
    // Predicated region
    $region33: #{_resample_padded.1} parent=5 // pred_check
      _
    $region34: #{_resample_padded.1} parent=5 // pred_check_branch
      %200 = sbr.rel (%p197) target = $region36
    $region35: #{_resample_padded.1} parent=5 // pred_region
      %s201 = ssub.s32 %s10, 1
      %p202 = scmp.lt.s32.totalorder %s19, 2
      %s203 = scalar_select %p202, %s19, 2
      %p204 = scmp.lt.s32.totalorder %s20, 0
      %s205 = scalar_select %p204, %s20, 0
      %s206 = smul.addr %s205, 4
      %s207 = smul.addr %s203, 4
      %s208 = sadd.s32 %s206, %s207
      %s209 = smul.addr %s208, 8
      %s210 = scalar_lea.vmem %s0, %s209
      %p211 = pneg %p50
      %p212 = pneg %p47
      %p213 = scmp.lt.s32.totalorder %s19, 2
      %s214 = scalar_select %p213, %s19, 2
      %p215 = scmp.lt.s32.totalorder %s20, 0
      %s216 = scalar_select %p215, %s20, 0
      %s217 = sadd.s32 %s216, %s214
      %s218 = smul.addr %s217, 8
      %s219 = scalar_lea.vmem %s1, %s218
      %p220 = pneg %p78
      %p221 = pneg %p75
      %p222 = pneg %p99
      %p223 = pneg %p96
      %p224 = pneg %p120
      %p225 = pneg %p117
      %p226 = pneg %p148
      %p227 = pneg %p145
      %p228 = scmp.lt.s32.totalorder %s19, 2
      %s229 = scalar_select %p228, %s19, 2
      %p230 = scmp.lt.s32.totalorder %s20, 0
      %s231 = scalar_select %p230, %s20, 0
      %s232 = smul.addr %s231, 3
      %s233 = smul.addr %s229, 3
      %s234 = sadd.s32 %s232, %s233
      %s235 = smul.addr %s234, 8
      %s236 = scalar_lea.vmem %s4, %s235
      %p237 = scmp.lt.s32.totalorder %s19, 2
      %s238 = scalar_select %p237, %s19, 2
      %p239 = scmp.lt.s32.totalorder %s20, 0
      %s240 = scalar_select %p239, %s20, 0
      %s241 = smul.addr %s240, 4
      %s242 = smul.addr %s238, 4
      %s243 = sadd.s32 %s241, %s242
      %s244 = smul.addr %s243, 8
      %s245 = scalar_lea.vmem %s0, %s244
      %p246 = scmp.lt.s32.totalorder %s19, 2
      %s247 = scalar_select %p246, %s19, 2
      %p248 = scmp.lt.s32.totalorder %s20, 0
      %s249 = scalar_select %p248, %s20, 0
      %s250 = sadd.s32 %s249, %s247
      %s251 = smul.addr %s250, 8
      %s252 = scalar_lea.vmem %s1, %s251
      %p253 = scmp.lt.s32.totalorder %s19, 2
      %s254 = scalar_select %p253, %s19, 2
      %p255 = scmp.lt.s32.totalorder %s20, 0
      %s256 = scalar_select %p255, %s20, 0
      %s257 = smul.addr %s256, 3
      %s258 = smul.addr %s254, 3
      %s259 = sadd.s32 %s257, %s258
      %s260 = smul.addr %s259, 8
      %s261 = scalar_lea.vmem %s4, %s260
      %v262 = vld [vmem:[%s245] sm:$0xff]
      %v263 = vld [vmem:[%s245 + $0x8] sm:$0xff]
      %v264 = vld [vmem:[%s245 + $0x10] sm:$0xff]
      %v265 = vld [vmem:[%s245 + $0x18] sm:$0xff]
      %v266 = vld [vmem:[%s252] sm:$0xff]
      %v267 = vld [vmem:[%s2] sm:$0xff]
      %v268 = vld [vmem:[%s2 + $0x8] sm:$0xff]
      %v269 = vld [vmem:[%s2 + $0x10] sm:$0xff]
      %v270 = vld [vmem:[%s2 + $0x18] sm:$0xff]
      %v271 = vld [vmem:[%s2 + $0x20] sm:$0xff]
      %v272 = vld [vmem:[%s2 + $0x28] sm:$0xff]
      %v273 = vld [vmem:[%s2 + $0x30] sm:$0xff]
      %v274 = vld [vmem:[%s2 + $0x38] sm:$0xff]
      %v275 = vld [vmem:[%s2 + $0x40] sm:$0xff]
      %v276 = vld [vmem:[%s2 + $0x48] sm:$0xff]
      %v277 = vld [vmem:[%s2 + $0x50] sm:$0xff]
      %v278 = vld [vmem:[%s2 + $0x58] sm:$0xff]
      %v279 = vld [vmem:[%s2 + $0x60] sm:$0xff]
      %v280 = vld [vmem:[%s2 + $0x68] sm:$0xff]
      %v281 = vld [vmem:[%s2 + $0x70] sm:$0xff]
      %v282 = vld [vmem:[%s2 + $0x78] sm:$0xff]
      %v283 = vld [vmem:[%s2 + $0x80] sm:$0xff]
      %v284 = vld [vmem:[%s2 + $0x88] sm:$0xff]
      %v285 = vld [vmem:[%s2 + $0x90] sm:$0xff]
      %v286 = vld [vmem:[%s2 + $0x98] sm:$0xff]
      %v287 = vld [vmem:[%s2 + $0xa0] sm:$0xff]
      %v288 = vld [vmem:[%s2 + $0xa8] sm:$0xff]
      %v289 = vld [vmem:[%s2 + $0xb0] sm:$0xff]
      %v290 = vld [vmem:[%s2 + $0xb8] sm:$0xff]
      %v291 = vld [vmem:[%s2 + $0xc0] sm:$0xff]
      %v292 = vld [vmem:[%s2 + $0xc8] sm:$0xff]
      %v293 = vld [vmem:[%s2 + $0xd0] sm:$0xff]
      %v294 = vld [vmem:[%s2 + $0xd8] sm:$0xff]
      %v295 = vld [vmem:[%s2 + $0xe0] sm:$0xff]
      %v296 = vld [vmem:[%s2 + $0xe8] sm:$0xff]
      %v297 = vld [vmem:[%s2 + $0xf0] sm:$0xff]
      %v298 = vld [vmem:[%s2 + $0xf8] sm:$0xff]
      %v299 = vld [vmem:[%s2 + $0x100] sm:$0xff]
      %v300 = vld [vmem:[%s2 + $0x108] sm:$0xff]
      %v301 = vld [vmem:[%s2 + $0x110] sm:$0xff]
      %v302 = vld [vmem:[%s2 + $0x118] sm:$0xff]
      %v303 = vld [vmem:[%s2 + $0x120] sm:$0xff]
      %v304 = vld [vmem:[%s2 + $0x128] sm:$0xff]
      %v305 = vld [vmem:[%s2 + $0x130] sm:$0xff]
      %v306 = vld [vmem:[%s2 + $0x138] sm:$0xff]
      %v307 = vld [vmem:[%s2 + $0x140] sm:$0xff]
      %v308 = vld [vmem:[%s2 + $0x148] sm:$0xff]
      %v309 = vld [vmem:[%s2 + $0x150] sm:$0xff]
      %v310 = vld [vmem:[%s2 + $0x158] sm:$0xff]
      %v311 = vld [vmem:[%s2 + $0x160] sm:$0xff]
      %v312 = vld [vmem:[%s2 + $0x168] sm:$0xff]
      %v313 = vld [vmem:[%s2 + $0x170] sm:$0xff]
      %v314 = vld [vmem:[%s2 + $0x178] sm:$0xff]
      %v315 = vld [vmem:[%s2 + $0x180] sm:$0xff]
      %v316 = vld [vmem:[%s2 + $0x188] sm:$0xff]
      %v317 = vld [vmem:[%s2 + $0x190] sm:$0xff]
      %v318 = vld [vmem:[%s2 + $0x198] sm:$0xff]
      %v319 = vld [vmem:[%s2 + $0x1a0] sm:$0xff]
      %v320 = vld [vmem:[%s2 + $0x1a8] sm:$0xff]
      %v321 = vld [vmem:[%s2 + $0x1b0] sm:$0xff]
      %v322 = vld [vmem:[%s2 + $0x1b8] sm:$0xff]
      %v323 = vld [vmem:[%s2 + $0x1c0] sm:$0xff]
      %v324 = vld [vmem:[%s2 + $0x1c8] sm:$0xff]
      %v325 = vld [vmem:[%s2 + $0x1d0] sm:$0xff]
      %v326 = vld [vmem:[%s2 + $0x1d8] sm:$0xff]
      %v327 = vld [vmem:[%s2 + $0x1e0] sm:$0xff]
      %v328 = vld [vmem:[%s2 + $0x1e8] sm:$0xff]
      %v329 = vld [vmem:[%s2 + $0x1f0] sm:$0xff]
      %v330 = vld [vmem:[%s2 + $0x1f8] sm:$0xff]
      %v331 = vld [vmem:[%s2 + $0x200] sm:$0xff]
      %v332 = vld [vmem:[%s2 + $0x208] sm:$0xff]
      %v333 = vld [vmem:[%s2 + $0x210] sm:$0xff]
      %v334 = vld [vmem:[%s2 + $0x218] sm:$0xff]
      %v335 = vld [vmem:[%s2 + $0x220] sm:$0xff]
      %v336 = vld [vmem:[%s2 + $0x228] sm:$0xff]
      %v337 = vld [vmem:[%s2 + $0x230] sm:$0xff]
      %v338 = vld [vmem:[%s2 + $0x238] sm:$0xff]
      %v339 = vld [vmem:[%s2 + $0x240] sm:$0xff]
      %v340 = vld [vmem:[%s2 + $0x248] sm:$0xff]
      %v341 = vld [vmem:[%s2 + $0x250] sm:$0xff]
      %v342 = vld [vmem:[%s2 + $0x258] sm:$0xff]
      %v343 = vld [vmem:[%s2 + $0x260] sm:$0xff]
      %v344 = vld [vmem:[%s2 + $0x268] sm:$0xff]
      %v345 = vld [vmem:[%s2 + $0x270] sm:$0xff]
      %v346 = vld [vmem:[%s2 + $0x278] sm:$0xff]
      %v347 = vld [vmem:[%s2 + $0x280] sm:$0xff]
      %v348 = vld [vmem:[%s2 + $0x288] sm:$0xff]
      %v349 = vld [vmem:[%s2 + $0x290] sm:$0xff]
      %v350 = vld [vmem:[%s2 + $0x298] sm:$0xff]
      %v351 = vld [vmem:[%s2 + $0x2a0] sm:$0xff]
      %v352 = vld [vmem:[%s2 + $0x2a8] sm:$0xff]
      %v353 = vld [vmem:[%s2 + $0x2b0] sm:$0xff]
      %v354 = vld [vmem:[%s2 + $0x2b8] sm:$0xff]
      %v355 = vld [vmem:[%s2 + $0x2c0] sm:$0xff]
      %v356 = vld [vmem:[%s2 + $0x2c8] sm:$0xff]
      %v357 = vld [vmem:[%s2 + $0x2d0] sm:$0xff]
      %v358 = vld [vmem:[%s2 + $0x2d8] sm:$0xff]
      %v359 = vld [vmem:[%s2 + $0x2e0] sm:$0xff]
      %v360 = vld [vmem:[%s2 + $0x2e8] sm:$0xff]
      %v361 = vld [vmem:[%s2 + $0x2f0] sm:$0xff]
      %v362 = vld [vmem:[%s2 + $0x2f8] sm:$0xff]
      %v363 = vld [vmem:[%s2 + $0x300] sm:$0xff]
      %v364 = vld [vmem:[%s2 + $0x308] sm:$0xff]
      %v365 = vld [vmem:[%s2 + $0x310] sm:$0xff]
      %v366 = vld [vmem:[%s2 + $0x318] sm:$0xff]
      %v367 = vld [vmem:[%s2 + $0x320] sm:$0xff]
      %v368 = vld [vmem:[%s2 + $0x328] sm:$0xff]
      %v369 = vld [vmem:[%s2 + $0x330] sm:$0xff]
      %v370 = vld [vmem:[%s2 + $0x338] sm:$0xff]
      %v371 = vld [vmem:[%s2 + $0x340] sm:$0xff]
      %v372 = vld [vmem:[%s2 + $0x348] sm:$0xff]
      %v373 = vld [vmem:[%s2 + $0x350] sm:$0xff]
      %v374 = vld [vmem:[%s2 + $0x358] sm:$0xff]
      %v375 = vld [vmem:[%s2 + $0x360] sm:$0xff]
      %v376 = vld [vmem:[%s2 + $0x368] sm:$0xff]
      %v377 = vld [vmem:[%s2 + $0x370] sm:$0xff]
      %v378 = vld [vmem:[%s2 + $0x378] sm:$0xff]
      %v379 = vld [vmem:[%s2 + $0x380] sm:$0xff]
      %v380 = vld [vmem:[%s2 + $0x388] sm:$0xff]
      %v381 = vld [vmem:[%s2 + $0x390] sm:$0xff]
      %v382 = vld [vmem:[%s2 + $0x398] sm:$0xff]
      %v383 = vld [vmem:[%s2 + $0x3a0] sm:$0xff]
      %v384 = vld [vmem:[%s2 + $0x3a8] sm:$0xff]
      %v385 = vld [vmem:[%s2 + $0x3b0] sm:$0xff]
      %v386 = vld [vmem:[%s2 + $0x3b8] sm:$0xff]
      %v387 = vld [vmem:[%s2 + $0x3c0] sm:$0xff]
      %v388 = vld [vmem:[%s2 + $0x3c8] sm:$0xff]
      %v389 = vld [vmem:[%s2 + $0x3d0] sm:$0xff]
      %v390 = vld [vmem:[%s2 + $0x3d8] sm:$0xff]
      %v391 = vld [vmem:[%s2 + $0x3e0] sm:$0xff]
      %v392 = vld [vmem:[%s2 + $0x3e8] sm:$0xff]
      %v393 = vld [vmem:[%s2 + $0x3f0] sm:$0xff]
      %v394 = vld [vmem:[%s2 + $0x3f8] sm:$0xff]
      %v395 = vld [vmem:[%s2 + $0x400] sm:$0xff]
      %v396 = vld [vmem:[%s2 + $0x408] sm:$0xff]
      %v397 = vld [vmem:[%s2 + $0x410] sm:$0xff]
      %v398 = vld [vmem:[%s2 + $0x418] sm:$0xff]
      %v399 = vld [vmem:[%s2 + $0x420] sm:$0xff]
      %v400 = vld [vmem:[%s2 + $0x428] sm:$0xff]
      %v401 = vld [vmem:[%s2 + $0x430] sm:$0xff]
      %v402 = vld [vmem:[%s2 + $0x438] sm:$0xff]
      %v403 = vld [vmem:[%s2 + $0x440] sm:$0xff]
      %v404 = vld [vmem:[%s2 + $0x448] sm:$0xff]
      %v405 = vld [vmem:[%s2 + $0x450] sm:$0xff]
      %v406 = vld [vmem:[%s2 + $0x458] sm:$0xff]
      %v407 = vld [vmem:[%s2 + $0x460] sm:$0xff]
      %v408 = vld [vmem:[%s2 + $0x468] sm:$0xff]
      %v409 = vld [vmem:[%s2 + $0x470] sm:$0xff]
      %v410 = vld [vmem:[%s2 + $0x478] sm:$0xff]
      %v411 = vld [vmem:[%s2 + $0x480] sm:$0xff]
      %v412 = vld [vmem:[%s2 + $0x488] sm:$0xff]
      %v413 = vld [vmem:[%s2 + $0x490] sm:$0xff]
      %v414 = vld [vmem:[%s2 + $0x498] sm:$0xff]
      %v415 = vld [vmem:[%s2 + $0x4a0] sm:$0xff]
      %v416 = vld [vmem:[%s2 + $0x4a8] sm:$0xff]
      %v417 = vld [vmem:[%s2 + $0x4b0] sm:$0xff]
      %v418 = vld [vmem:[%s2 + $0x4b8] sm:$0xff]
      %v419 = vld [vmem:[%s2 + $0x4c0] sm:$0xff]
      %v420 = vld [vmem:[%s2 + $0x4c8] sm:$0xff]
      %v421 = vld [vmem:[%s2 + $0x4d0] sm:$0xff]
      %v422 = vld [vmem:[%s2 + $0x4d8] sm:$0xff]
      %v423 = vld [vmem:[%s2 + $0x4e0] sm:$0xff]
      %v424 = vld [vmem:[%s2 + $0x4e8] sm:$0xff]
      %v425 = vld [vmem:[%s2 + $0x4f0] sm:$0xff]
      %v426 = vld [vmem:[%s2 + $0x4f8] sm:$0xff]
      %v427 = vld [vmem:[%s2 + $0x500] sm:$0xff]
      %v428 = vld [vmem:[%s2 + $0x508] sm:$0xff]
      %v429 = vld [vmem:[%s2 + $0x510] sm:$0xff]
      %v430 = vld [vmem:[%s2 + $0x518] sm:$0xff]
      %v431 = vld [vmem:[%s2 + $0x520] sm:$0xff]
      %v432 = vld [vmem:[%s2 + $0x528] sm:$0x1]
      %v433 = vld [vmem:[%s2 + $0x530] sm:$0x1]
      %v434 = vld [vmem:[%s2 + $0x538] sm:$0x1]
      %v435 = vld [vmem:[%s3] sm:$0xff]
      %v436 = vld [vmem:[%s3 + $0x8] sm:$0xff]
      %v437 = vld [vmem:[%s3 + $0x10] sm:$0xff]
      %v438 = vld [vmem:[%s3 + $0x18] sm:$0xff]
      %v439 = vld [vmem:[%s3 + $0x20] sm:$0xff]
      %v440 = vld [vmem:[%s3 + $0x28] sm:$0xff]
      %v441 = vld [vmem:[%s3 + $0x30] sm:$0xff]
      %v442 = vld [vmem:[%s3 + $0x38] sm:$0xff]
      %v443 = vld [vmem:[%s3 + $0x40] sm:$0xff]
      %vm444 = vcmask 195584
      %v446 = vsel %vm444, %v266, 0
      %448 = vmatprep.subr.mxu0 %v436
      %449 = vmatpush1.msra.mxu0 %v435
      %450 = vmatprep.subr.mxu0 %v439
      %451 = vmatpush1.msra.mxu0 %v438
      %452 = vmatprep.subr.mxu0 %v442
      %453 = vmatpush1.msra.mxu0 %v441
      %454 = vmatprep.subr.mxu0 0.0
      %455 = vmatpush1.msra.mxu0 0.0
      %456 = vmatprep.subr.mxu0 0.0
      %457 = vmatpush1.msra.mxu0 0.0
      %458 = vmatprep.subr.mxu0 0.0
      %459 = vmatpush1.msra.mxu0 0.0
      %460 = vmatprep.subr.mxu0 0.0
      %461 = vmatpush1.msra.mxu0 0.0
      %462 = vmatprep.subr.mxu0 0.0
      %463 = vmatpush1.msra.mxu0 0.0
      %464 = vmatprep.subr.mxu0 0.0
      %465 = vmatpush1.msra.mxu0 0.0
      %466 = vmatprep.subr.mxu0 0.0
      %467 = vmatpush1.msra.mxu0 0.0
      %468 = vmatprep.subr.mxu0 0.0
      %469 = vmatpush1.msra.mxu0 0.0
      %470 = vmatprep.subr.mxu0 0.0
      %471 = vmatpush1.msra.mxu0 0.0
      %472 = vmatprep.subr.mxu0 0.0
      %473 = vmatpush1.msra.mxu0 0.0
      %474 = vmatprep.subr.mxu0 0.0
      %475 = vmatpush1.msra.mxu0 0.0
      %476 = vmatprep.subr.mxu0 0.0
      %477 = vmatpush1.msra.mxu0 0.0
      %478 = vmatprep.subr.mxu0 0.0
      %479 = vmatpush1.msra.mxu0 0.0
      %480 = vmatprep.subr.mxu0 0.0
      %481 = vmatpush1.msra.mxu0 0.0
      %482 = vmatprep.subr.mxu0 0.0
      %483 = vmatpush1.msra.mxu0 0.0
      %484 = vmatprep.subr.mxu0 0.0
      %485 = vmatpush1.msra.mxu0 0.0
      %486 = vmatprep.subr.mxu0 0.0
      %487 = vmatpush1.msra.mxu0 0.0
      %488 = vmatprep.subr.mxu0 0.0
      %489 = vmatpush1.msra.mxu0 0.0
      %490 = vmatprep.subr.mxu0 0.0
      %491 = vmatpush1.msra.mxu0 0.0
      %492 = vmatprep.subr.mxu0 0.0
      %493 = vmatpush1.msra.mxu0 0.0
      %494 = vmatprep.subr.mxu0 0.0
      %495 = vmatpush1.msra.mxu0 0.0
      %496 = vmatprep.subr.mxu0 0.0
      %497 = vmatpush1.msra.mxu0 0.0
      %498 = vmatprep.subr.mxu0 0.0
      %499 = vmatpush1.msra.mxu0 0.0
      %500 = vmatprep.subr.mxu0 0.0
      %501 = vmatpush1.msra.mxu0 0.0
      %502 = vmatprep.subr.mxu0 0.0
      %503 = vmatpush1.msra.mxu0 0.0
      %504 = vmatprep.subr.mxu0 0.0
      %505 = vmatpush1.msra.mxu0 0.0
      %506 = vmatprep.subr.mxu0 0.0
      %507 = vmatpush1.msra.mxu0 0.0
      %508 = vmatprep.subr.mxu0 0.0
      %509 = vmatpush1.msra.mxu0 0.0
      %510 = vmatprep.subr.mxu0 0.0
      %511 = vmatpush1.msra.mxu0 0.0
      %512 = vmatprep.mubr.f32.mxu0 0.0
      %513 = vmatmul.mubr.f32.gmra.mrb[0].mxu0 %v446
      %v514 = vpop.f32.mrb[0].mxu0
      %v515 = vadd.f32 0.0, %v514
      %v516 = vpop.f32.mrb[0].mxu0
      %v517 = vadd.f32 0.0, %v516
      %518 = vdwg.mxu0
      %519 = vmatprep.subr.mxu0 0.0
      %520 = vmatpush1.msra.mxu0 %v437
      %521 = vmatprep.subr.mxu0 0.0
      %522 = vmatpush1.msra.mxu0 %v440
      %523 = vmatprep.subr.mxu0 0.0
      %524 = vmatpush1.msra.mxu0 %v443
      %525 = vmatprep.subr.mxu0 0.0
      %526 = vmatpush1.msra.mxu0 0.0
      %527 = vmatprep.subr.mxu0 0.0
      %528 = vmatpush1.msra.mxu0 0.0
      %529 = vmatprep.subr.mxu0 0.0
      %530 = vmatpush1.msra.mxu0 0.0
      %531 = vmatprep.subr.mxu0 0.0
      %532 = vmatpush1.msra.mxu0 0.0
      %533 = vmatprep.subr.mxu0 0.0
      %534 = vmatpush1.msra.mxu0 0.0
      %535 = vmatprep.subr.mxu0 0.0
      %536 = vmatpush1.msra.mxu0 0.0
      %537 = vmatprep.subr.mxu0 0.0
      %538 = vmatpush1.msra.mxu0 0.0
      %539 = vmatprep.subr.mxu0 0.0
      %540 = vmatpush1.msra.mxu0 0.0
      %541 = vmatprep.subr.mxu0 0.0
      %542 = vmatpush1.msra.mxu0 0.0
      %543 = vmatprep.subr.mxu0 0.0
      %544 = vmatpush1.msra.mxu0 0.0
      %545 = vmatprep.subr.mxu0 0.0
      %546 = vmatpush1.msra.mxu0 0.0
      %547 = vmatprep.subr.mxu0 0.0
      %548 = vmatpush1.msra.mxu0 0.0
      %549 = vmatprep.subr.mxu0 0.0
      %550 = vmatpush1.msra.mxu0 0.0
      %551 = vmatprep.subr.mxu0 0.0
      %552 = vmatpush1.msra.mxu0 0.0
      %553 = vmatprep.subr.mxu0 0.0
      %554 = vmatpush1.msra.mxu0 0.0
      %555 = vmatprep.subr.mxu0 0.0
      %556 = vmatpush1.msra.mxu0 0.0
      %557 = vmatprep.subr.mxu0 0.0
      %558 = vmatpush1.msra.mxu0 0.0
      %559 = vmatprep.subr.mxu0 0.0
      %560 = vmatpush1.msra.mxu0 0.0
      %561 = vmatprep.subr.mxu0 0.0
      %562 = vmatpush1.msra.mxu0 0.0
      %563 = vmatprep.subr.mxu0 0.0
      %564 = vmatpush1.msra.mxu0 0.0
      %565 = vmatprep.subr.mxu0 0.0
      %566 = vmatpush1.msra.mxu0 0.0
      %567 = vmatprep.subr.mxu0 0.0
      %568 = vmatpush1.msra.mxu0 0.0
      %569 = vmatprep.subr.mxu0 0.0
      %570 = vmatpush1.msra.mxu0 0.0
      %571 = vmatprep.subr.mxu0 0.0
      %572 = vmatpush1.msra.mxu0 0.0
      %573 = vmatprep.subr.mxu0 0.0
      %574 = vmatpush1.msra.mxu0 0.0
      %575 = vmatprep.subr.mxu0 0.0
      %576 = vmatpush1.msra.mxu0 0.0
      %577 = vmatprep.subr.mxu0 0.0
      %578 = vmatpush1.msra.mxu0 0.0
      %579 = vmatprep.subr.mxu0 0.0
      %580 = vmatpush1.msra.mxu0 0.0
      %581 = vmatprep.subr.mxu0 0.0
      %582 = vmatpush1.msra.mxu0 0.0
      %583 = vmatprep.mubr.f32.mxu0 0.0
      %584 = vmatmul.mubr.f32.gmra.mrb[0].mxu0 %v446
      %v585 = vpop.f32.mrb[0].mxu0
      %v586 = vadd.f32 0.0, %v585
      %v587 = vpop.f32.mrb[0].mxu0
      %588 = vdwg.mxu0
      %vm589 = vcmask 465920
      %v591 = vsel %vm589, %v265, 0
      %vm593 = vcmask 1040384
      %v595 = vsel %vm593, %v432, 0
      %v598 = vsel %vm593, %v433, 0
      %v601 = vsel %vm593, %v434, 0
      %603 = vmatprep.subr.mxu0 %v268
      %604 = vmatpush1.msra.mxu0 %v267
      %605 = vmatprep.subr.mxu0 %v271
      %606 = vmatpush1.msra.mxu0 %v270
      %607 = vmatprep.subr.mxu0 %v274
      %608 = vmatpush1.msra.mxu0 %v273
      %609 = vmatprep.subr.mxu0 %v277
      %610 = vmatpush1.msra.mxu0 %v276
      %611 = vmatprep.subr.mxu0 %v280
      %612 = vmatpush1.msra.mxu0 %v279
      %613 = vmatprep.subr.mxu0 %v283
      %614 = vmatpush1.msra.mxu0 %v282
      %615 = vmatprep.subr.mxu0 %v286
      %616 = vmatpush1.msra.mxu0 %v285
      %617 = vmatprep.subr.mxu0 %v289
      %618 = vmatpush1.msra.mxu0 %v288
      %619 = vmatprep.subr.mxu0 %v292
      %620 = vmatpush1.msra.mxu0 %v291
      %621 = vmatprep.subr.mxu0 %v295
      %622 = vmatpush1.msra.mxu0 %v294
      %623 = vmatprep.subr.mxu0 %v298
      %624 = vmatpush1.msra.mxu0 %v297
      %625 = vmatprep.subr.mxu0 %v301
      %626 = vmatpush1.msra.mxu0 %v300
      %627 = vmatprep.subr.mxu0 %v304
      %628 = vmatpush1.msra.mxu0 %v303
      %629 = vmatprep.subr.mxu0 %v307
      %630 = vmatpush1.msra.mxu0 %v306
      %631 = vmatprep.subr.mxu0 %v310
      %632 = vmatpush1.msra.mxu0 %v309
      %633 = vmatprep.subr.mxu0 %v313
      %634 = vmatpush1.msra.mxu0 %v312
      %635 = vmatprep.subr.mxu0 %v316
      %636 = vmatpush1.msra.mxu0 %v315
      %637 = vmatprep.subr.mxu0 %v319
      %638 = vmatpush1.msra.mxu0 %v318
      %639 = vmatprep.subr.mxu0 %v322
      %640 = vmatpush1.msra.mxu0 %v321
      %641 = vmatprep.subr.mxu0 %v325
      %642 = vmatpush1.msra.mxu0 %v324
      %643 = vmatprep.subr.mxu0 %v328
      %644 = vmatpush1.msra.mxu0 %v327
      %645 = vmatprep.subr.mxu0 %v331
      %646 = vmatpush1.msra.mxu0 %v330
      %647 = vmatprep.subr.mxu0 %v334
      %648 = vmatpush1.msra.mxu0 %v333
      %649 = vmatprep.subr.mxu0 %v337
      %650 = vmatpush1.msra.mxu0 %v336
      %651 = vmatprep.subr.mxu0 %v340
      %652 = vmatpush1.msra.mxu0 %v339
      %653 = vmatprep.subr.mxu0 %v343
      %654 = vmatpush1.msra.mxu0 %v342
      %655 = vmatprep.subr.mxu0 %v346
      %656 = vmatpush1.msra.mxu0 %v345
      %657 = vmatprep.subr.mxu0 %v349
      %658 = vmatpush1.msra.mxu0 %v348
      %659 = vmatprep.subr.mxu0 %v352
      %660 = vmatpush1.msra.mxu0 %v351
      %661 = vmatprep.subr.mxu0 %v355
      %662 = vmatpush1.msra.mxu0 %v354
      %663 = vmatprep.subr.mxu0 %v358
      %664 = vmatpush1.msra.mxu0 %v357
      %665 = vmatprep.subr.mxu0 %v361
      %666 = vmatpush1.msra.mxu0 %v360
      %667 = vmatprep.mubr.f32.mxu0 %v263
      %668 = vmatmul.mubr.f32.gmra.mrb[0].mxu0 %v262
      %v669 = vpop.f32.mrb[0].mxu0
      %v670 = vadd.f32 %v515, %v669
      %v671 = vpop.f32.mrb[0].mxu0
      %v672 = vadd.f32 %v517, %v671
      %673 = vdwg.mxu0
      %674 = vmatprep.subr.mxu0 %v364
      %675 = vmatpush1.msra.mxu0 %v363
      %676 = vmatprep.subr.mxu0 %v367
      %677 = vmatpush1.msra.mxu0 %v366
      %678 = vmatprep.subr.mxu0 %v370
      %679 = vmatpush1.msra.mxu0 %v369
      %680 = vmatprep.subr.mxu0 %v373
      %681 = vmatpush1.msra.mxu0 %v372
      %682 = vmatprep.subr.mxu0 %v376
      %683 = vmatpush1.msra.mxu0 %v375
      %684 = vmatprep.subr.mxu0 %v379
      %685 = vmatpush1.msra.mxu0 %v378
      %686 = vmatprep.subr.mxu0 %v382
      %687 = vmatpush1.msra.mxu0 %v381
      %688 = vmatprep.subr.mxu0 %v385
      %689 = vmatpush1.msra.mxu0 %v384
      %690 = vmatprep.subr.mxu0 %v388
      %691 = vmatpush1.msra.mxu0 %v387
      %692 = vmatprep.subr.mxu0 %v391
      %693 = vmatpush1.msra.mxu0 %v390
      %694 = vmatprep.subr.mxu0 %v394
      %695 = vmatpush1.msra.mxu0 %v393
      %696 = vmatprep.subr.mxu0 %v397
      %697 = vmatpush1.msra.mxu0 %v396
      %698 = vmatprep.subr.mxu0 %v400
      %699 = vmatpush1.msra.mxu0 %v399
      %700 = vmatprep.subr.mxu0 %v403
      %701 = vmatpush1.msra.mxu0 %v402
      %702 = vmatprep.subr.mxu0 %v406
      %703 = vmatpush1.msra.mxu0 %v405
      %704 = vmatprep.subr.mxu0 %v409
      %705 = vmatpush1.msra.mxu0 %v408
      %706 = vmatprep.subr.mxu0 %v412
      %707 = vmatpush1.msra.mxu0 %v411
      %708 = vmatprep.subr.mxu0 %v415
      %709 = vmatpush1.msra.mxu0 %v414
      %710 = vmatprep.subr.mxu0 %v418
      %711 = vmatpush1.msra.mxu0 %v417
      %712 = vmatprep.subr.mxu0 %v421
      %713 = vmatpush1.msra.mxu0 %v420
      %714 = vmatprep.subr.mxu0 %v424
      %715 = vmatpush1.msra.mxu0 %v423
      %716 = vmatprep.subr.mxu0 %v427
      %717 = vmatpush1.msra.mxu0 %v426
      %718 = vmatprep.subr.mxu0 %v430
      %719 = vmatpush1.msra.mxu0 %v429
      %720 = vmatprep.subr.mxu0 %v598
      %721 = vmatpush1.msra.mxu0 %v595
      %722 = vmatprep.subr.mxu0 0.0
      %723 = vmatpush1.msra.mxu0 0.0
      %724 = vmatprep.subr.mxu0 0.0
      %725 = vmatpush1.msra.mxu0 0.0
      %726 = vmatprep.subr.mxu0 0.0
      %727 = vmatpush1.msra.mxu0 0.0
      %728 = vmatprep.subr.mxu0 0.0
      %729 = vmatpush1.msra.mxu0 0.0
      %730 = vmatprep.subr.mxu0 0.0
      %731 = vmatpush1.msra.mxu0 0.0
      %732 = vmatprep.subr.mxu0 0.0
      %733 = vmatpush1.msra.mxu0 0.0
      %734 = vmatprep.subr.mxu0 0.0
      %735 = vmatpush1.msra.mxu0 0.0
      %736 = vmatprep.subr.mxu0 0.0
      %737 = vmatpush1.msra.mxu0 0.0
      %738 = vmatprep.mubr.f32.mxu0 %v591
      %739 = vmatmul.mubr.f32.gmra.mrb[0].mxu0 %v264
      %v740 = vpop.f32.mrb[0].mxu0
      %v741 = vadd.f32 %v670, %v740
      %v742 = vpop.f32.mrb[0].mxu0
      %v743 = vadd.f32 %v672, %v742
      %744 = vdwg.mxu0
      %745 = vmatprep.subr.mxu0 0.0
      %746 = vmatpush1.msra.mxu0 %v269
      %747 = vmatprep.subr.mxu0 0.0
      %748 = vmatpush1.msra.mxu0 %v272
      %749 = vmatprep.subr.mxu0 0.0
      %750 = vmatpush1.msra.mxu0 %v275
      %751 = vmatprep.subr.mxu0 0.0
      %752 = vmatpush1.msra.mxu0 %v278
      %753 = vmatprep.subr.mxu0 0.0
      %754 = vmatpush1.msra.mxu0 %v281
      %755 = vmatprep.subr.mxu0 0.0
      %756 = vmatpush1.msra.mxu0 %v284
      %757 = vmatprep.subr.mxu0 0.0
      %758 = vmatpush1.msra.mxu0 %v287
      %759 = vmatprep.subr.mxu0 0.0
      %760 = vmatpush1.msra.mxu0 %v290
      %761 = vmatprep.subr.mxu0 0.0
      %762 = vmatpush1.msra.mxu0 %v293
      %763 = vmatprep.subr.mxu0 0.0
      %764 = vmatpush1.msra.mxu0 %v296
      %765 = vmatprep.subr.mxu0 0.0
      %766 = vmatpush1.msra.mxu0 %v299
      %767 = vmatprep.subr.mxu0 0.0
      %768 = vmatpush1.msra.mxu0 %v302
      %769 = vmatprep.subr.mxu0 0.0
      %770 = vmatpush1.msra.mxu0 %v305
      %771 = vmatprep.subr.mxu0 0.0
      %772 = vmatpush1.msra.mxu0 %v308
      %773 = vmatprep.subr.mxu0 0.0
      %774 = vmatpush1.msra.mxu0 %v311
      %775 = vmatprep.subr.mxu0 0.0
      %776 = vmatpush1.msra.mxu0 %v314
      %777 = vmatprep.subr.mxu0 0.0
      %778 = vmatpush1.msra.mxu0 %v317
      %779 = vmatprep.subr.mxu0 0.0
      %780 = vmatpush1.msra.mxu0 %v320
      %781 = vmatprep.subr.mxu0 0.0
      %782 = vmatpush1.msra.mxu0 %v323
      %783 = vmatprep.subr.mxu0 0.0
      %784 = vmatpush1.msra.mxu0 %v326
      %785 = vmatprep.subr.mxu0 0.0
      %786 = vmatpush1.msra.mxu0 %v329
      %787 = vmatprep.subr.mxu0 0.0
      %788 = vmatpush1.msra.mxu0 %v332
      %789 = vmatprep.subr.mxu0 0.0
      %790 = vmatpush1.msra.mxu0 %v335
      %791 = vmatprep.subr.mxu0 0.0
      %792 = vmatpush1.msra.mxu0 %v338
      %793 = vmatprep.subr.mxu0 0.0
      %794 = vmatpush1.msra.mxu0 %v341
      %795 = vmatprep.subr.mxu0 0.0
      %796 = vmatpush1.msra.mxu0 %v344
      %797 = vmatprep.subr.mxu0 0.0
      %798 = vmatpush1.msra.mxu0 %v347
      %799 = vmatprep.subr.mxu0 0.0
      %800 = vmatpush1.msra.mxu0 %v350
      %801 = vmatprep.subr.mxu0 0.0
      %802 = vmatpush1.msra.mxu0 %v353
      %803 = vmatprep.subr.mxu0 0.0
      %804 = vmatpush1.msra.mxu0 %v356
      %805 = vmatprep.subr.mxu0 0.0
      %806 = vmatpush1.msra.mxu0 %v359
      %807 = vmatprep.subr.mxu0 0.0
      %808 = vmatpush1.msra.mxu0 %v362
      %809 = vmatprep.mubr.f32.mxu0 %v263
      %810 = vmatmul.mubr.f32.gmra.mrb[0].mxu0 %v262
      %v811 = vpop.f32.mrb[0].mxu0
      %v812 = vadd.f32 %v586, %v811
      %v813 = vpop.f32.mrb[0].mxu0
      %814 = vdwg.mxu0
      %815 = vmatprep.subr.mxu0 0.0
      %816 = vmatpush1.msra.mxu0 %v365
      %817 = vmatprep.subr.mxu0 0.0
      %818 = vmatpush1.msra.mxu0 %v368
      %819 = vmatprep.subr.mxu0 0.0
      %820 = vmatpush1.msra.mxu0 %v371
      %821 = vmatprep.subr.mxu0 0.0
      %822 = vmatpush1.msra.mxu0 %v374
      %823 = vmatprep.subr.mxu0 0.0
      %824 = vmatpush1.msra.mxu0 %v377
      %825 = vmatprep.subr.mxu0 0.0
      %826 = vmatpush1.msra.mxu0 %v380
      %827 = vmatprep.subr.mxu0 0.0
      %828 = vmatpush1.msra.mxu0 %v383
      %829 = vmatprep.subr.mxu0 0.0
      %830 = vmatpush1.msra.mxu0 %v386
      %831 = vmatprep.subr.mxu0 0.0
      %832 = vmatpush1.msra.mxu0 %v389
      %833 = vmatprep.subr.mxu0 0.0
      %834 = vmatpush1.msra.mxu0 %v392
      %835 = vmatprep.subr.mxu0 0.0
      %836 = vmatpush1.msra.mxu0 %v395
      %837 = vmatprep.subr.mxu0 0.0
      %838 = vmatpush1.msra.mxu0 %v398
      %839 = vmatprep.subr.mxu0 0.0
      %840 = vmatpush1.msra.mxu0 %v401
      %841 = vmatprep.subr.mxu0 0.0
      %842 = vmatpush1.msra.mxu0 %v404
      %843 = vmatprep.subr.mxu0 0.0
      %844 = vmatpush1.msra.mxu0 %v407
      %845 = vmatprep.subr.mxu0 0.0
      %846 = vmatpush1.msra.mxu0 %v410
      %847 = vmatprep.subr.mxu0 0.0
      %848 = vmatpush1.msra.mxu0 %v413
      %849 = vmatprep.subr.mxu0 0.0
      %850 = vmatpush1.msra.mxu0 %v416
      %851 = vmatprep.subr.mxu0 0.0
      %852 = vmatpush1.msra.mxu0 %v419
      %853 = vmatprep.subr.mxu0 0.0
      %854 = vmatpush1.msra.mxu0 %v422
      %855 = vmatprep.subr.mxu0 0.0
      %856 = vmatpush1.msra.mxu0 %v425
      %857 = vmatprep.subr.mxu0 0.0
      %858 = vmatpush1.msra.mxu0 %v428
      %859 = vmatprep.subr.mxu0 0.0
      %860 = vmatpush1.msra.mxu0 %v431
      %861 = vmatprep.subr.mxu0 0.0
      %862 = vmatpush1.msra.mxu0 %v601
      %863 = vmatprep.subr.mxu0 0.0
      %864 = vmatpush1.msra.mxu0 0.0
      %865 = vmatprep.subr.mxu0 0.0
      %866 = vmatpush1.msra.mxu0 0.0
      %867 = vmatprep.subr.mxu0 0.0
      %868 = vmatpush1.msra.mxu0 0.0
      %869 = vmatprep.subr.mxu0 0.0
      %870 = vmatpush1.msra.mxu0 0.0
      %871 = vmatprep.subr.mxu0 0.0
      %872 = vmatpush1.msra.mxu0 0.0
      %873 = vmatprep.subr.mxu0 0.0
      %874 = vmatpush1.msra.mxu0 0.0
      %875 = vmatprep.subr.mxu0 0.0
      %876 = vmatpush1.msra.mxu0 0.0
      %877 = vmatprep.subr.mxu0 0.0
      %878 = vmatpush1.msra.mxu0 0.0
      %879 = vmatprep.mubr.f32.mxu0 %v591
      %880 = vmatmul.mubr.f32.gmra.mrb[0].mxu0 %v264
      %v881 = vpop.f32.mrb[0].mxu0
      %v882 = vadd.f32 %v812, %v881
      %v883 = vpop.f32.mrb[0].mxu0
      %884 = vdwg.mxu0
      %885 = vst [vmem:[%s261] sm:$0xff] %v741
      %886 = vst [vmem:[%s261 + $0x8] sm:$0xff] %v743
      %vm887 = vcmask 523264
      %888 = vst.msk [vmem:[%s261 + $0x10] sm:$0xff] %vm887, %v882
      %p889 = scmp.lt.s32.totalorder %s19, 2
      %s890 = scalar_select %p889, %s19, 2
      %p891 = scmp.lt.s32.totalorder %s20, 0
      %s892 = scalar_select %p891, %s20, 0
      %s893 = smul.addr %s892, 3
      %s894 = smul.addr %s890, 3
      %s895 = sadd.s32 %s893, %s894
      %s896 = smul.addr %s895, 8
      %s897 = scalar_lea.vmem %s4, %s896
      // Predicated region
      $region37: #{_resample_padded.1} parent=35 // pred_check
        %p898 = pneg %p145
      $region38: #{_resample_padded.1} parent=35 // pred_check_branch
        %900 = sbr.rel (%p898) target = $region40
      $region39: #{_resample_padded.1} parent=35 // pred_region
        _
      $region40: #{_resample_padded.1} parent=35 // pred_fallthru
        _
    $region36: #{_resample_padded.1} parent=5 // pred_fallthru
      _
    %p901 = scmp.le.s32.totalorder 2, %s10
    // Predicated region
    $region41: #{_resample_padded.1} parent=5 // pred_check
      %p902 = pneg %p901
    $region42: #{_resample_padded.1} parent=5 // pred_check_branch
      %904 = sbr.rel (%p902) target = $region44
    $region43: #{_resample_padded.1} parent=5 // pred_region
      %s905 = ssub.s32 %s10, 2
      // Predicated region
      $region45: #{_resample_padded.1} parent=43 // pred_check
        %p906 = pneg %p151
      $region46: #{_resample_padded.1} parent=43 // pred_check_branch
        %908 = sbr.rel (%p906) target = $region48
      $region47: #{_resample_padded.1} parent=43 // pred_region
        %p909 = scmp.lt.s32.totalorder %s21, 2
        %s910 = scalar_select %p909, %s21, 2
        %p911 = scmp.lt.s32.totalorder %s22, 0
        %s912 = scalar_select %p911, %s22, 0
        %s913 = smul.addr %s912, 3
        %s914 = smul.addr %s910, 3
        %s915 = sadd.s32 %s913, %s914
        %s916 = smul.addr %s915, 8
        %s917 = scalar_lea.vmem %s4, %s916
      $region48: #{_resample_padded.1} parent=43 // pred_fallthru
        _
    $region44: #{_resample_padded.1} parent=5 // pred_fallthru
      _
  $region6: #{_resample_padded.1} parent=0 // loop_footer
    %s14 = sadd.s32 1, %s10
  $region7: #{_resample_padded.1} parent=0 // loop_footer_branch
    %9 = sbr.rel target = $region3
  $region8: #{_resample_padded.1} parent=0 // loop_exit
    _

</llo_original>
